<compile_context>
chip_gen: v7x
topology: tpu7x:2x2x1
jax: 0.10.0
libtpu: 0.0.40
codegen_flags: <defaults>
</compile_context>

<pallas_src>
import jax
import jax.numpy as jnp
from jax import lax
from jax.experimental import pallas as pl
from jax.experimental.pallas import tpu as pltpu

LANES = 128


# --------------------------------------------------------------------------
# Generation-aware budgets
# --------------------------------------------------------------------------
def _vmem_budgets():
    """Returns (vmem_limit_bytes, default_block_rows), derived from the chip."""
    try:
        info = pltpu.get_tpu_info()
        phys = int(getattr(info, "vmem_capacity_bytes", 0) or 0)
    except Exception:
        phys = 0
    if phys <= 0:
        phys = 64 * 1024 * 1024                 # conservative fallback (v7x-sized VMEM)
    vmem_limit = min(96 * 1024 * 1024, (phys * 3) // 4)   # ~48 MiB v7x / 96 MiB v5e,v6e
    block_rows = 8192 if phys >= 128 * 1024 * 1024 else 4096   # 4 MiB / 2 MiB f32 tiles
    return vmem_limit, block_rows


# --------------------------------------------------------------------------
# Fused one-HBM-read path (input staged in VMEM)
# --------------------------------------------------------------------------
def _softmax_fused(x2d, out_dtype, rows, br, nt, vmem_limit):
    """Phase 0: stream x tile-by-tile, stage raw tiles in VMEM, online reduce.
    Phase 1: normalize out of the staged copy.  One HBM read + one HBM write."""
    need_mask = (nt * br != rows)
    in_dtype = x2d.dtype

    def kernel(x_ref, o_ref, stage_ref, m_vec, s_vec, m_stat, s_stat):
        p = pl.program_id(0)        # 0 = reduce/stage, 1 = normalize
        j = pl.program_id(1)        # row-tile index

        @pl.when((p == 0) & (j == 0))
        def _init():
            m_vec[...] = jnp.full(m_vec.shape, -jnp.inf, jnp.float32)
            s_vec[...] = jnp.zeros(s_vec.shape, jnp.float32)

        @pl.when(p == 0)
        def _reduce():
            xr = x_ref[...]
            start = pl.multiple_of(j * br, br)
            stage_ref[pl.ds(start, br), :] = xr            # stage raw tile for phase 1
            x = xr.astype(jnp.float32)                     # cast in-kernel (narrow HBM I/O)
            if need_mask:                                  # ragged last tile: kill OOB rows
                rid = lax.broadcasted_iota(jnp.int32, x.shape, 0)
                x = jnp.where(rid < (rows - j * br), x, -jnp.inf)
            m_old = m_vec[...]                             # (1, 128) per-lane accumulators
            m_new = jnp.maximum(m_old, jnp.max(x, axis=0, keepdims=True))
            m_safe = jnp.where(m_new == -jnp.inf, 0.0, m_new)   # all-(-inf) lane guard
            s_vec[...] = (s_vec[...] * jnp.exp(m_old - m_safe)
                          + jnp.sum(jnp.exp(x - m_safe), axis=0, keepdims=True))
            m_vec[...] = m_new

        @pl.when((p == 1) & (j == 0))
        def _finalize():                                   # single cross-lane reduce
            mv = m_vec[...]
            m_glob = jnp.max(mv, keepdims=True)            # (1, 1)
            m_safe = jnp.where(m_glob == -jnp.inf, 0.0, m_glob)
            s_glob = jnp.sum(s_vec[...] * jnp.exp(mv - m_safe), keepdims=True)
            m_stat[...] = m_glob
            s_stat[...] = 1.0 / s_glob                     # one reciprocal, N multiplies

        @pl.when(p == 1)
        def _normalize():
            start = pl.multiple_of(j * br, br)
            xs = stage_ref[pl.ds(start, br), :].astype(jnp.float32)
            o_ref[...] = (jnp.exp(xs - m_stat[...]) * s_stat[...]).astype(o_ref.dtype)

    return pl.pallas_call(
        kernel,
        out_shape=jax.ShapeDtypeStruct((rows, LANES), out_dtype),
        grid=(2, nt),
        # During phase 1 the index map keeps returning the last tile, so the
        # pipeline elides the copy and x is read from HBM exactly once.
        in_specs=[pl.BlockSpec((br, LANES),
                               lambda p, j: (j * (1 - p) + (nt - 1) * p, 0))],
        # Output block is parked at tile 0 during phase 0 (never written back)
        # and walks the tiles during phase 1.
        out_specs=pl.BlockSpec((br, LANES), lambda p, j: (j * p, 0)),
        scratch_shapes=[
            pltpu.VMEM((nt * br, LANES), in_dtype),   # staged copy of x
            pltpu.VMEM((1, LANES), jnp.float32),      # per-lane running max
            pltpu.VMEM((1, LANES), jnp.float32),      # per-lane running sum
            pltpu.VMEM((1, 1), jnp.float32),          # global max
            pltpu.VMEM((1, 1), jnp.float32),          # 1 / global sum
        ],
        compiler_params=pltpu.CompilerParams(
            dimension_semantics=("arbitrary", "arbitrary"),
            vmem_limit_bytes=vmem_limit),
    )(x2d)


# --------------------------------------------------------------------------
# Two-pass path for tensors that do not fit in a VMEM staging buffer
# --------------------------------------------------------------------------
@jax.jit
def _combine_partial_stats(m_parts, s_parts):
    """Merge per-core (max, sum-of-exp) partials into (global max, 1/global sum)."""
    m_glob = jnp.max(m_parts)
    m_safe = jnp.where(m_glob == -jnp.inf, 0.0, m_glob)
    s_glob = jnp.sum(s_parts * jnp.exp(m_parts - m_safe))
    return (m_glob.reshape(1, 1).astype(jnp.float32),
            (1.0 / s_glob).reshape(1, 1).astype(jnp.float32))


def _softmax_two_pass(x2d, out_dtype, rows, br, nt, vmem_limit):
    """Pass 1: online reduction split over a size-2 'parallel' axis (both
    TensorCores on v7x).  Pass 2: normalize with SMEM scalars.  2 reads + 1 write."""
    tpc = pl.cdiv(nt, 2)                        # tiles handled per core
    need_mask = (2 * tpc * br != rows)          # ragged tail and/or fully-OOB tiles

    def reduce_kernel(x_ref, m_out, s_out, m_vec, s_vec):
        c = pl.program_id(0)                    # "core" axis (parallel)
        i = pl.program_id(1)                    # tile within this core (arbitrary)

        @pl.when(i == 0)
        def _init():
            m_vec[...] = jnp.full(m_vec.shape, -jnp.inf, jnp.float32)
            s_vec[...] = jnp.zeros(s_vec.shape, jnp.float32)

        x = x_ref[...].astype(jnp.float32)
        if need_mask:
            rid = lax.broadcasted_iota(jnp.int32, x.shape, 0)
            valid = rows - (c * tpc + i) * br   # <= 0 for fully out-of-range tiles
            x = jnp.where(rid < valid, x, -jnp.inf)
        m_old = m_vec[...]                      # (1, 128) per-lane accumulators
        m_new = jnp.maximum(m_old, jnp.max(x, axis=0, keepdims=True))
        m_safe = jnp.where(m_new == -jnp.inf, 0.0, m_new)
        s_vec[...] = (s_vec[...] * jnp.exp(m_old - m_safe)
                      + jnp.sum(jnp.exp(x - m_safe), axis=0, keepdims=True))
        m_vec[...] = m_new

        @pl.when(i == tpc - 1)
        def _finalize():
            mv = m_vec[...]
            m_part = jnp.max(mv, keepdims=True)
            m_safe2 = jnp.where(m_part == -jnp.inf, 0.0, m_part)
            s_part = jnp.sum(s_vec[...] * jnp.exp(mv - m_safe2), keepdims=True)
            m_out[...] = m_part.reshape(m_out.shape)
            s_out[...] = s_part.reshape(s_out.shape)

    m_parts, s_parts = pl.pallas_call(
        reduce_kernel,
        out_shape=(jax.ShapeDtypeStruct((2, 1, 1), jnp.float32),
                   jax.ShapeDtypeStruct((2, 1, 1), jnp.float32)),
        grid=(2, tpc),
        in_specs=[pl.BlockSpec(
            (br, LANES),
            # Clamp logical tile ids past the end onto the last real tile
            # (those tiles are fully masked to -inf inside the kernel).
            lambda c, i: (jnp.minimum(c * tpc + i, nt - 1), 0))],
        out_specs=(pl.BlockSpec((1, 1, 1), lambda c, i: (c, 0, 0)),
                   pl.BlockSpec((1, 1, 1), lambda c, i: (c, 0, 0))),
        scratch_shapes=[pltpu.VMEM((1, LANES), jnp.float32),
                        pltpu.VMEM((1, LANES), jnp.float32)],
        compiler_params=pltpu.CompilerParams(
            dimension_semantics=("parallel", "arbitrary"),
            vmem_limit_bytes=vmem_limit),
    )(x2d)

    m_glob, inv_glob = _combine_partial_stats(m_parts, s_parts)

    def apply_kernel(m_ref, inv_ref, x_ref, o_ref):
        x = x_ref[...].astype(jnp.float32)
        m = m_ref[0, 0]                          # SMEM scalars -> scalar path
        inv = inv_ref[0, 0]
        o_ref[...] = (jnp.exp(x - m) * inv).astype(o_ref.dtype)

    return pl.pallas_call(
        apply_kernel,
        out_shape=jax.ShapeDtypeStruct((rows, LANES), out_dtype),
        grid=(nt,),
        in_specs=[pl.BlockSpec(memory_space=pltpu.MemorySpace.SMEM),
                  pl.BlockSpec(memory_space=pltpu.MemorySpace.SMEM),
                  pl.BlockSpec((br, LANES), lambda i: (i, 0))],
        out_specs=pl.BlockSpec((br, LANES), lambda i: (i, 0)),
        compiler_params=pltpu.CompilerParams(
            dimension_semantics=("parallel",),
            vmem_limit_bytes=vmem_limit),
    )(m_glob, inv_glob, x2d)


# --------------------------------------------------------------------------
# Wrapper
# --------------------------------------------------------------------------
def softmax_stable(x, *, block_rows=None, force_two_pass=False):
    """Stable softmax over ALL elements of x (any shape), like SoftmaxStable."""
    orig_shape = x.shape
    if not jnp.issubdtype(x.dtype, jnp.floating):
        x = x.astype(jnp.float32)               # softmax of int input returns float
    out_dtype = x.dtype
    n = x.size
    if n == 0:
        return x.reshape(orig_shape)

    vmem_limit, default_br = _vmem_budgets()
    if block_rows is None:
        block_rows = default_br

    itemsize = jnp.dtype(out_dtype).itemsize
    row_align = 8 * max(1, 4 // itemsize)       # 8 (f32) / 16 (bf16, f16) / 32 (8-bit)

    # Lane/sublane-dense layout: (rows, 128) with rows a multiple of row_align.
    # -inf padding never wins the max and adds 0 to sum(exp); it only happens
    # when n is not already aligned, so aligned inputs pay no extra HBM pass.
    x_flat = x.reshape(-1)
    rows = pl.cdiv(n, LANES)
    rows = pl.cdiv(rows, row_align) * row_align
    padded_n = rows * LANES
    if padded_n != n:
        x_flat = jnp.pad(x_flat, (0, padded_n - n), constant_values=-jnp.inf)
    x2d = x_flat.reshape(rows, LANES)

    br = min(block_rows, rows)
    br = max(row_align, (br // row_align) * row_align)
    nt = pl.cdiv(rows, br)

    # Pick the one-read fused path when the staged copy (+ pipeline buffers and
    # in-kernel f32 temporaries) fits comfortably inside the VMEM budget.
    tile_elems = br * LANES
    fused_vmem = (nt * br * LANES * itemsize        # staging scratch
                  + 4 * tile_elems * itemsize       # in/out double buffers
                  + 3 * tile_elems * 4              # f32 temporaries
                  + (1 << 16))
    if (not force_two_pass) and fused_vmem <= int(0.85 * vmem_limit):
        out2d = _softmax_fused(x2d, out_dtype, rows, br, nt, vmem_limit)
    else:
        out2d = _softmax_two_pass(x2d, out_dtype, rows, br, nt, vmem_limit)

    out_flat = out2d.reshape(-1)
    if padded_n != n:
        out_flat = out_flat[:n]                 # drop -inf padding (all zeros)
    return out_flat.reshape(orig_shape)


# --------------------------------------------------------------------------
# Test
# --------------------------------------------------------------------------
def _ref_softmax(x):
    xf = x.astype(jnp.float32).reshape(-1)
    e = jnp.exp(xf - jnp.max(xf))
    return (e / jnp.sum(e)).reshape(x.shape).astype(x.dtype)


if __name__ == "__main__":
    key = jax.random.PRNGKey(0)
    k1, k2, k3, k4 = jax.random.split(key, 4)

    # 1) Tiny 1-D input (same scale as the module's example tensor) -> fused path.
    x_small = jax.random.normal(k1, (8,), dtype=jnp.float32)
    y_small = softmax_stable(x_small)
    jax.block_until_ready(y_small)
    assert y_small.shape == x_small.shape and y_small.dtype == x_small.dtype
    assert jnp.allclose(y_small, _ref_softmax(x_small), atol=1e-6, rtol=1e-6)
    assert jnp.allclose(jnp.sum(y_small), 1.0, atol=1e-6)

    # 2) Small 4-D f32 input (2*4*16*16 = 2048 elems, already lane-aligned).
    x_mid = jax.random.normal(k2, (2, 4, 16, 16), dtype=jnp.float32)
    y_mid = softmax_stable(x_mid)
    jax.block_until_ready(y_mid)
    assert jnp.allclose(y_mid, _ref_softmax(x_mid), atol=1e-6, rtol=1e-6)
    assert jnp.allclose(jnp.sum(y_mid), 1.0, atol=1e-6)

    # 2b) Same input in bf16: stays narrow in HBM, cast to f32 inside the kernel.
    x_bf16 = x_mid.astype(jnp.bfloat16)
    y_bf16 = softmax_stable(x_bf16)
    jax.block_until_ready(y_bf16)
    assert y_bf16.dtype == jnp.bfloat16
    assert jnp.allclose(y_bf16.astype(jnp.float32),
                        _ref_softmax(x_bf16).astype(jnp.float32), atol=1e-3)

    # 3) Fused path with several tiles and a ragged tail (forced small tiles).
    x_big = jax.random.normal(k3, (300_000,), dtype=jnp.float32)
    y_big = softmax_stable(x_big, block_rows=512)
    jax.block_until_ready(y_big)
    assert jnp.allclose(y_big, _ref_softmax(x_big), rtol=2e-5, atol=1e-10)
    assert jnp.allclose(jnp.sum(y_big), 1.0, atol=1e-4)

    # 4) Two-pass (online-reduction) path, forced, exercising the two-core split,
    #    fully out-of-range tiles, the ragged-tile mask and the partial combine.
    x_tiled = jax.random.normal(k4, (5000,), dtype=jnp.float32)
    y_tiled = softmax_stable(x_tiled, block_rows=8, force_two_pass=True)
    jax.block_until_ready(y_tiled)
    assert jnp.allclose(y_tiled, _ref_softmax(x_tiled), rtol=1e-5, atol=1e-8)
    assert jnp.allclose(jnp.sum(y_tiled), 1.0, atol=1e-5)

    print("KERNEL_OK")
</pallas_src>

<mosaic_0001>
module attributes {stable_mosaic.version = 11 : i64} {
  func.func @kernel(%arg0: i32, %arg1: i32, %arg2: memref<8x128xf32, #tpu.memory_space<vmem>>, %arg3: memref<8x128xf32, #tpu.memory_space<vmem>>, %arg4: memref<8x128xf32, #tpu.memory_space<vmem>>, %arg5: memref<1x128xf32, #tpu.memory_space<vmem>>, %arg6: memref<1x128xf32, #tpu.memory_space<vmem>>, %arg7: memref<1x1xf32, #tpu.memory_space<vmem>>, %arg8: memref<1x1xf32, #tpu.memory_space<vmem>>) attributes {dimension_semantics = [#tpu.dimension_semantics<arbitrary>, #tpu.dimension_semantics<arbitrary>], iteration_bounds = array<i64: 2, 1>, scalar_prefetch = 0 : i64, scratch_operands = 5 : i64, tpu.core_type = #tpu.core_type<tc>, window_params = [{transform_indices = @transform_0, window_bounds = array<i64: 8, 128>}, {transform_indices = @transform_1, window_bounds = array<i64: 8, 128>}]} {
    %c0_i32 = arith.constant 0 : i32
    %0 = arith.cmpi eq, %arg0, %c0_i32 : i32
    %c0_i32_0 = arith.constant 0 : i32
    %1 = arith.cmpi eq, %arg1, %c0_i32_0 : i32
    %2 = arith.andi %0, %1 : i1
    %3 = arith.extui %2 : i1 to i32
    %c0_i32_1 = arith.constant 0 : i32
    %4 = arith.cmpi ne, %3, %c0_i32_1 : i32
    scf.if %4 {
      %cst = arith.constant 0xFF800000 : f32
      %16 = vector.broadcast %cst : f32 to vector<1x128xf32>
      %c0 = arith.constant 0 : index
      %c0_8 = arith.constant 0 : index
      %17 = vector.load %arg5[%c0, %c0_8] : memref<1x128xf32, #tpu.memory_space<vmem>>, vector<1x128xf32>
      tpu.vector_store %arg5[%c0, %c0_8], %16 {strides = array<i32>} : memref<1x128xf32, #tpu.memory_space<vmem>>, vector<1x128xf32>,
      %cst_9 = arith.constant 0.000000e+00 : f32
      %18 = vector.broadcast %cst_9 : f32 to vector<1x128xf32>
      %c0_10 = arith.constant 0 : index
      %c0_11 = arith.constant 0 : index
      %19 = vector.load %arg6[%c0_10, %c0_11] : memref<1x128xf32, #tpu.memory_space<vmem>>, vector<1x128xf32>
      tpu.vector_store %arg6[%c0_10, %c0_11], %18 {strides = array<i32>} : memref<1x128xf32, #tpu.memory_space<vmem>>, vector<1x128xf32>,
    } else {
    }
    %c0_i32_2 = arith.constant 0 : i32
    %5 = arith.cmpi eq, %arg0, %c0_i32_2 : i32
    %6 = arith.extui %5 : i1 to i32
    %c0_i32_3 = arith.constant 0 : i32
    %7 = arith.cmpi ne, %6, %c0_i32_3 : i32
    scf.if %7 {
      %c0 = arith.constant 0 : index
      %c0_8 = arith.constant 0 : index
      %16 = vector.load %arg2[%c0, %c0_8] : memref<8x128xf32, #tpu.memory_space<vmem>>, vector<8x128xf32>
      %c8_i32 = arith.constant 8 : i32
      %17 = arith.muli %arg1, %c8_i32 : i32
      %18 = tpu.assume_multiple %17, 8 : i32
      %19 = arith.index_cast %18 : i32 to index
      %c0_9 = arith.constant 0 : index
      %20 = vector.load %arg4[%19, %c0_9] : memref<8x128xf32, #tpu.memory_space<vmem>>, vector<8x128xf32>
      tpu.vector_store %arg4[%19, %c0_9], %16 {strides = array<i32>} : memref<8x128xf32, #tpu.memory_space<vmem>>, vector<8x128xf32>,
      %c0_10 = arith.constant 0 : index
      %c0_11 = arith.constant 0 : index
      %21 = vector.load %arg5[%c0_10, %c0_11] : memref<1x128xf32, #tpu.memory_space<vmem>>, vector<1x128xf32>
      %cst = arith.constant dense<0xFF800000> : vector<128xf32>
      %22 = vector.multi_reduction <maximumf>, %16, %cst [0] : vector<8x128xf32> to vector<128xf32>
      %23 = vector.shape_cast %22 : vector<128xf32> to vector<1x128xf32>
      %24 = arith.maximumf %21, %23 : vector<1x128xf32>
      %cst_12 = arith.constant 0xFF800000 : f32
      %25 = vector.broadcast %cst_12 : f32 to vector<1x128xf32>
      %26 = arith.cmpf oeq, %24, %25 : vector<1x128xf32>
      %cst_13 = arith.constant 0.000000e+00 : f32
      %27 = vector.broadcast %cst_13 : f32 to vector<1x128xf32>
      %28 = arith.select %26, %27, %24 : vector<1x128xi1>, vector<1x128xf32>
      %c0_14 = arith.constant 0 : index
      %c0_15 = arith.constant 0 : index
      %29 = vector.load %arg6[%c0_14, %c0_15] : memref<1x128xf32, #tpu.memory_space<vmem>>, vector<1x128xf32>
      %30 = arith.subf %21, %28 : vector<1x128xf32>
      %31 = math.exp %30 : vector<1x128xf32>
      %32 = arith.mulf %29, %31 : vector<1x128xf32>
      %33 = vector.broadcast %28 : vector<1x128xf32> to vector<8x128xf32>
      %34 = arith.subf %16, %33 : vector<8x128xf32>
      %35 = math.exp %34 : vector<8x128xf32>
      %cst_16 = arith.constant dense<0.000000e+00> : vector<128xf32>
      %36 = vector.multi_reduction <add>, %35, %cst_16 [0] : vector<8x128xf32> to vector<128xf32>
      %37 = vector.shape_cast %36 : vector<128xf32> to vector<1x128xf32>
      %38 = arith.addf %32, %37 : vector<1x128xf32>
      %c0_17 = arith.constant 0 : index
      %c0_18 = arith.constant 0 : index
      %39 = vector.load %arg6[%c0_17, %c0_18] : memref<1x128xf32, #tpu.memory_space<vmem>>, vector<1x128xf32>
      tpu.vector_store %arg6[%c0_17, %c0_18], %38 {strides = array<i32>} : memref<1x128xf32, #tpu.memory_space<vmem>>, vector<1x128xf32>,
      %c0_19 = arith.constant 0 : index
      %c0_20 = arith.constant 0 : index
      %40 = vector.load %arg5[%c0_19, %c0_20] : memref<1x128xf32, #tpu.memory_space<vmem>>, vector<1x128xf32>
      tpu.vector_store %arg5[%c0_19, %c0_20], %24 {strides = array<i32>} : memref<1x128xf32, #tpu.memory_space<vmem>>, vector<1x128xf32>,
    } else {
    }
    %c1_i32 = arith.constant 1 : i32
    %8 = arith.cmpi eq, %arg0, %c1_i32 : i32
    %c0_i32_4 = arith.constant 0 : i32
    %9 = arith.cmpi eq, %arg1, %c0_i32_4 : i32
    %10 = arith.andi %8, %9 : i1
    %11 = arith.extui %10 : i1 to i32
    %c0_i32_5 = arith.constant 0 : i32
    %12 = arith.cmpi ne, %11, %c0_i32_5 : i32
    scf.if %12 {
      %c0 = arith.constant 0 : index
      %c0_8 = arith.constant 0 : index
      %16 = vector.load %arg5[%c0, %c0_8] : memref<1x128xf32, #tpu.memory_space<vmem>>, vector<1x128xf32>
      %17 = vector.shape_cast %16 : vector<1x128xf32> to vector<1x1x128xf32>
      %cst = arith.constant dense<0xFF800000> : vector<1xf32>
      %18 = vector.multi_reduction <maximumf>, %17, %cst [1, 2] : vector<1x1x128xf32> to vector<1xf32>
      %19 = vector.shape_cast %18 : vector<1xf32> to vector<1x1x1xf32>
      %20 = vector.extract %19[0, 0, 0] : f32 from vector<1x1x1xf32>
      %21 = vector.broadcast %20 : f32 to vector<1x1xf32>
      %cst_9 = arith.constant 0xFF800000 : f32
      %22 = vector.broadcast %cst_9 : f32 to vector<1x1xf32>
      %23 = arith.cmpf oeq, %21, %22 : vector<1x1xf32>
      %cst_10 = arith.constant 0.000000e+00 : f32
      %24 = vector.broadcast %cst_10 : f32 to vector<1x1xf32>
      %25 = arith.select %23, %24, %21 : vector<1x1xi1>, vector<1x1xf32>
      %c0_11 = arith.constant 0 : index
      %c0_12 = arith.constant 0 : index
      %26 = vector.load %arg6[%c0_11, %c0_12] : memref<1x128xf32, #tpu.memory_space<vmem>>, vector<1x128xf32>
      %27 = vector.broadcast %25 : vector<1x1xf32> to vector<1x128xf32>
      %28 = arith.subf %16, %27 : vector<1x128xf32>
      %29 = math.exp %28 : vector<1x128xf32>
      %30 = arith.mulf %26, %29 : vector<1x128xf32>
      %31 = vector.shape_cast %30 : vector<1x128xf32> to vector<1x1x128xf32>
      %cst_13 = arith.constant dense<0.000000e+00> : vector<1xf32>
      %32 = vector.multi_reduction <add>, %31, %cst_13 [1, 2] : vector<1x1x128xf32> to vector<1xf32>
      %33 = vector.shape_cast %32 : vector<1xf32> to vector<1x1x1xf32>
      %34 = vector.extract %33[0, 0, 0] : f32 from vector<1x1x1xf32>
      %35 = vector.broadcast %34 : f32 to vector<1x1xf32>
      %c0_14 = arith.constant 0 : index
      %c0_15 = arith.constant 0 : index
      %36 = vector.load %arg7[%c0_14, %c0_15] : memref<1x1xf32, #tpu.memory_space<vmem>>, vector<1x1xf32>
      tpu.vector_store %arg7[%c0_14, %c0_15], %21 {strides = array<i32>} : memref<1x1xf32, #tpu.memory_space<vmem>>, vector<1x1xf32>,
      %cst_16 = arith.constant 1.000000e+00 : f32
      %37 = vector.broadcast %cst_16 : f32 to vector<1x1xf32>
      %38 = arith.divf %37, %35 : vector<1x1xf32>
      %c0_17 = arith.constant 0 : index
      %c0_18 = arith.constant 0 : index
      %39 = vector.load %arg8[%c0_17, %c0_18] : memref<1x1xf32, #tpu.memory_space<vmem>>, vector<1x1xf32>
      tpu.vector_store %arg8[%c0_17, %c0_18], %38 {strides = array<i32>} : memref<1x1xf32, #tpu.memory_space<vmem>>, vector<1x1xf32>,
    } else {
    }
    %c1_i32_6 = arith.constant 1 : i32
    %13 = arith.cmpi eq, %arg0, %c1_i32_6 : i32
    %14 = arith.extui %13 : i1 to i32
    %c0_i32_7 = arith.constant 0 : i32
    %15 = arith.cmpi ne, %14, %c0_i32_7 : i32
    scf.if %15 {
      %c8_i32 = arith.constant 8 : i32
      %16 = arith.muli %arg1, %c8_i32 : i32
      %17 = tpu.assume_multiple %16, 8 : i32
      %18 = arith.index_cast %17 : i32 to index
      %c0 = arith.constant 0 : index
      %19 = vector.load %arg4[%18, %c0] : memref<8x128xf32, #tpu.memory_space<vmem>>, vector<8x128xf32>
      %c0_8 = arith.constant 0 : index
      %c0_9 = arith.constant 0 : index
      %20 = vector.load %arg7[%c0_8, %c0_9] : memref<1x1xf32, #tpu.memory_space<vmem>>, vector<1x1xf32>
      %21 = vector.broadcast %20 : vector<1x1xf32> to vector<8x128xf32>
      %22 = arith.subf %19, %21 : vector<8x128xf32>
      %23 = math.exp %22 : vector<8x128xf32>
      %c0_10 = arith.constant 0 : index
      %c0_11 = arith.constant 0 : index
      %24 = vector.load %arg8[%c0_10, %c0_11] : memref<1x1xf32, #tpu.memory_space<vmem>>, vector<1x1xf32>
      %25 = vector.broadcast %24 : vector<1x1xf32> to vector<8x128xf32>
      %26 = arith.mulf %23, %25 : vector<8x128xf32>
      %c0_12 = arith.constant 0 : index
      %c0_13 = arith.constant 0 : index
      %27 = vector.load %arg3[%c0_12, %c0_13] : memref<8x128xf32, #tpu.memory_space<vmem>>, vector<8x128xf32>
      tpu.vector_store %arg3[%c0_12, %c0_13], %26 {strides = array<i32>} : memref<8x128xf32, #tpu.memory_space<vmem>>, vector<8x128xf32>,
    } else {
    }
    return
  }
  func.func @transform_0(%arg0: i32, %arg1: i32) -> (i32, i32) {
    %c1_i32 = arith.constant 1 : i32
    %0 = arith.subi %c1_i32, %arg0 : i32
    %1 = arith.muli %arg1, %0 : i32
    %c0_i32 = arith.constant 0 : i32
    %2 = arith.muli %c0_i32, %arg0 : i32
    %3 = arith.addi %1, %2 : i32
    %c0_i32_0 = arith.constant 0 : i32
    %c0_i32_1 = arith.constant 0 : i32
    return %3, %c0_i32_0 : i32, i32
  }
  func.func @transform_1(%arg0: i32, %arg1: i32) -> (i32, i32) {
    %0 = arith.muli %arg1, %arg0 : i32
    %c0_i32 = arith.constant 0 : i32
    %c0_i32_0 = arith.constant 0 : i32
    return %0, %c0_i32 : i32, i32
  }
}

</mosaic_0001>

<llo_original>
// kernel: tpu_custom_call.1
$region0: #{tpu_custom_call.1}
  #allocation0 [shape = 'u32[]', space=smem, size = 0x4, offset = 0x4, fixed_abs, tag = 'smem constant byte address 0x4 - core index']
  #allocation1 [shape = 'u32[144,128]{1,0:T(1,128)}', space=vmem, size = 0x12000, scoped, tag = 'internal scratch']
  #allocation2 [shape = 'f32[8,128]{1,0:T(8,128)}', space=vmem, size = 0x1000, scoped, tag = 'scratch operand']
  #allocation3 [shape = 'f32[1,128]{1,0:T(1,128)}', space=vmem, size = 0x200, scoped, tag = 'scratch operand']
  #allocation4 [shape = 'f32[1,128]{1,0:T(1,128)}', space=vmem, size = 0x200, scoped, tag = 'scratch operand']
  #allocation5 [shape = 'f32[1,1]{1,0:T(1,128)}', space=vmem, size = 0x200, scoped, tag = 'scratch operand']
  #allocation6 [shape = 'f32[1,1]{1,0:T(1,128)}', space=vmem, size = 0x200, scoped, tag = 'scratch operand']
  %s0 = inlined_call_operand.hbm [shape: f32[8,128], index: 0, kind: input, shape index: {}]
  %s1 = inlined_call_operand.hbm [shape: f32[8,128], index: 1, kind: output, shape index: {}]
  %s2 = sld [smem:[#allocation0]]
  $region57: #{tpu_custom_call.1} parent=0
    _
  %s4 = ssub.s32 1, %s2
  %s5 = scalar_select 0, %s4, %s2
  $region1: #{tpu_custom_call.1} parent=0
    #allocation7 [shape = 'u8[8192]{0}', space=vmem, size = 0x2000, scoped, tag = 'input window, operand 0']
    #allocation8 [shape = 's32[2]{0}', space=sflag, size = 0x8, scoped, tag = 'scoped memory for tpu_custom_call.1']
    #allocation9 [shape = 's32[2]{0}', space=sflag, size = 0x8, scoped, tag = 'scoped memory for tpu_custom_call.1']
    #allocation10 [shape = 'u8[8192]{0}', space=vmem, size = 0x2000, scoped, tag = 'output window, operand 0']
    %6 = vsyncpa [#allocation8], 0
    %s7 = scalar_lea.sflag [#allocation8], 1
    %8 = vsyncpa %s7, 0
    %9 = vsyncpa [#allocation9], 0
    %s10 = scalar_lea.sflag [#allocation9], 1
    %11 = vsyncpa %s10, 0
    loop: start=0, step=1, limit=4
    $region2: #{tpu_custom_call.1} parent=1 // loop_pre_header
      _
    $region3: #{tpu_custom_call.1} parent=1 // loop_header
      %s13 = sphi 0, %s17
      %p14 = scmp.ge.s32.totalorder %s13, 4
      %s20 = sphi 0, %s32
      %s21 = sphi 0, %s28
      %s22 = sphi 0, %s20
      %s23 = sphi 0, %s21
      %s24 = sphi 0, %s22
      %s25 = sphi 0, %s23
      %s39 = sphi 0, %s41
      %s42 = sphi 0, %s39
      %s43 = sphi 0, %s42
      %s59 = sphi 0, %s43
      %s67 = sphi 0, %s69
      %s70 = sphi 0, %s67
      %s71 = sphi 0, %s70
      %s87 = sphi 0, %s71
    $region4: #{tpu_custom_call.1} parent=1 // loop_header_branch
      %16 = sbr.rel (%p14) target = $region8
    $region5: #{tpu_custom_call.1} parent=1 // loop_body
      %s18 = ssub.s32 %s13, 1
      %s19 = ssub.s32 %s13, 2
      %s26 = sadd.s32 1, %s21
      %p27 = scmp.ge.s32.totalorder %s26, 1
      %s28 = scalar_select %p27, 0, %s26
      %s29 = sadd.s32 1, %s20
      %s30 = scalar_select %p27, %s29, %s20
      %p31 = scmp.ge.s32.totalorder %s30, 2
      %s32 = scalar_select %p31, 0, %s30
      %s33 = ssub.s32 1, %s20
      %s34 = smul.u32 %s21, %s33
      %s35 = ssub.s32 1, %s32
      %s36 = smul.u32 %s28, %s35
      %s37 = ssub.s32 %s34, %s36
      %p38 = scmp.eq.s32.totalorder %s37, 0
      %s40 = sadd.s32 %s39, 1
      %s41 = scalar_select %p38, %s39, %s40
      %p44 = pneg %p38
      %p45 = scmp.eq.s32.totalorder %s13, 1
      %p46 = por %p44, %p45
      %p47 = scmp.ne.s32.totalorder %s39, %s42
      %p48 = scmp.eq.s32.totalorder %s13, 0
      %p49 = por %p47, %p48
      %p50 = scmp.ne.s32.totalorder %s39, %s42
      %p51 = scmp.eq.s32.totalorder %s18, 1
      %p52 = por %p50, %p51
      %p53 = scmp.ne.s32.totalorder %s42, %s43
      %p54 = scmp.eq.s32.totalorder %s18, 0
      %p55 = por %p53, %p54
      %p56 = scmp.ne.s32.totalorder %s42, %s43
      %p57 = scmp.eq.s32.totalorder %s19, 1
      %p58 = por %p56, %p57
      %p60 = scmp.ne.s32.totalorder %s43, %s59
      %p61 = scmp.eq.s32.totalorder %s19, 0
      %p62 = por %p60, %p61
      %s63 = smul.u32 %s21, %s20
      %s64 = smul.u32 %s28, %s32
      %s65 = ssub.s32 %s63, %s64
      %p66 = scmp.eq.s32.totalorder %s65, 0
      %s68 = sadd.s32 %s67, 1
      %s69 = scalar_select %p66, %s67, %s68
      %p72 = pneg %p66
      %p73 = scmp.eq.s32.totalorder %s13, 1
      %p74 = por %p72, %p73
      %p75 = scmp.ne.s32.totalorder %s67, %s70
      %p76 = scmp.eq.s32.totalorder %s13, 0
      %p77 = por %p75, %p76
      %p78 = scmp.ne.s32.totalorder %s67, %s70
      %p79 = scmp.eq.s32.totalorder %s18, 1
      %p80 = por %p78, %p79
      %p81 = scmp.ne.s32.totalorder %s70, %s71
      %p82 = scmp.eq.s32.totalorder %s18, 0
      %p83 = por %p81, %p82
      %p84 = scmp.ne.s32.totalorder %s70, %s71
      %p85 = scmp.eq.s32.totalorder %s19, 1
      %p86 = por %p84, %p85
      %p88 = scmp.ne.s32.totalorder %s71, %s87
      %p89 = scmp.eq.s32.totalorder %s19, 0
      %p90 = por %p88, %p89
      %p91 = scmp.le.s32.totalorder 1, %s13
      %p92 = scmp.lt.s32.totalorder %s13, 3
      %p93 = pnand %p91, %p92
      %p94 = pneg %p93
      // Predicated region
      $region9: #{tpu_custom_call.1} parent=5 // pred_check
        _
      $region10: #{tpu_custom_call.1} parent=5 // pred_check_branch
        %96 = sbr.rel (%p93) target = $region12
      $region11: #{tpu_custom_call.1} parent=5 // pred_region
        %s97 = ssub.s32 %s13, 1
      $region12: #{tpu_custom_call.1} parent=5 // pred_fallthru
        _
      %p98 = scmp.lt.s32.totalorder %s13, 2
      // Predicated region
      $region13: #{tpu_custom_call.1} parent=5 // pred_check
        %p99 = pneg %p98
      $region14: #{tpu_custom_call.1} parent=5 // pred_check_branch
        %101 = sbr.rel (%p99) target = $region16
      $region15: #{tpu_custom_call.1} parent=5 // pred_region
        // Predicated region
        $region17: #{tpu_custom_call.1} parent=15 // pred_check
          %p102 = pneg %p49
        $region18: #{tpu_custom_call.1} parent=15 // pred_check_branch
          %104 = sbr.rel (%p102) target = $region20
        $region19: #{tpu_custom_call.1} parent=15 // pred_region
          %s105 = sand.u32 %s39, 1
          %s106 = scalar_lea.sflag [#allocation8], %s105
          %s107 = sand.u32 %s39, 1
          %s108 = smul.addr %s107, 8
          %s109 = scalar_lea.vmem [#allocation7], %s108
          %s110 = ssub.s32 1, %s20
          %s111 = smul.u32 %s21, %s110
          %s113 = ssub.s32 128, 128
          %114 = vsyncadd %s106, %s113
          %s115 = smul.addr %s111, 128
          %s116 = scalar_lea.hbm %s0, %s115
          %s118 = sshll.u32 %s109, 4
          %s119 = int_to_ptr.vmem [resolvable:$true] %s118
          %121 = dma.hbm_to_vmem [thread:$0]  %s116, 128, %s119, %s106
        $region20: #{tpu_custom_call.1} parent=15 // pred_fallthru
          _
      $region16: #{tpu_custom_call.1} parent=5 // pred_fallthru
        _
      %p122 = scmp.le.s32.totalorder 1, %s13
      %p123 = scmp.lt.s32.totalorder %s13, 3
      %p124 = pnand %p122, %p123
      %p125 = pneg %p124
      // Predicated region
      $region21: #{tpu_custom_call.1} parent=5 // pred_check
        _
      $region22: #{tpu_custom_call.1} parent=5 // pred_check_branch
        %127 = sbr.rel (%p124) target = $region24
      $region23: #{tpu_custom_call.1} parent=5 // pred_region
        %s128 = ssub.s32 %s13, 1
        %s129 = sand.u32 %s42, 1
        %s130 = scalar_lea.sflag [#allocation8], %s129
        %s131 = sand.u32 %s42, 1
        %s132 = smul.addr %s131, 8
        %s133 = scalar_lea.vmem [#allocation7], %s132
        // Predicated region
        $region25: #{tpu_custom_call.1} parent=23 // pred_check
          %p134 = pneg %p55
        $region26: #{tpu_custom_call.1} parent=23 // pred_check_branch
          %136 = sbr.rel (%p134) target = $region28
        $region27: #{tpu_custom_call.1} parent=23 // pred_region
          %137 = dma.done %s130, 128
        $region28: #{tpu_custom_call.1} parent=23 // pred_fallthru
          _
        %s138 = sand.u32 %s42, 1
        %s139 = scalar_lea.sflag [#allocation8], %s138
        %s140 = sand.u32 %s42, 1
        %s141 = smul.addr %s140, 8
        %s142 = scalar_lea.vmem [#allocation7], %s141
        %p143 = pneg %p55
        %p144 = pneg %p52
        %p145 = pneg %p83
        %p146 = pneg %p80
        %s147 = sand.u32 %s70, 1
        %s148 = scalar_lea.sflag [#allocation9], %s147
        %s149 = sand.u32 %s70, 1
        %s150 = smul.addr %s149, 8
        %s151 = scalar_lea.vmem [#allocation10], %s150
        %s152 = ssub.s32 1, %s22
        %s153 = smul.u32 %s23, %s152
        %s154 = smul.u32 %s23, %s22
        %p155 = scmp.eq.s32.totalorder %s22, 0
        %p156 = scmp.eq.s32.totalorder %s23, 0
        %p157 = pnand %p155, %p156
        %p158 = pneg %p157
        // Predicated region
        $region29: #{tpu_custom_call.1} parent=23 // pred_check
          _
        $region30: #{tpu_custom_call.1} parent=23 // pred_check_branch
          %160 = sbr.rel (%p157) target = $region32
        $region31: #{tpu_custom_call.1} parent=23 // pred_region
          %161 = vst [vmem:[#allocation3] sm:$0x1] -inf
          %162 = vst [vmem:[#allocation4] sm:$0x1] 0.0
        $region32: #{tpu_custom_call.1} parent=23 // pred_fallthru
          _
        // Predicated region
        $region33: #{tpu_custom_call.1} parent=23 // pred_check
          %p163 = pneg %p155
        $region34: #{tpu_custom_call.1} parent=23 // pred_check_branch
          %165 = sbr.rel (%p163) target = $region36
        $region35: #{tpu_custom_call.1} parent=23 // pred_region
          %v166 = vld [vmem:[%s133] sm:$0xff]
          %s167 = smul.u32 %s23, 8
          %s168 = scalar_lea.vmem [#allocation2], %s167
          %169 = vst [vmem:[%s168] sm:$0xff] %v166
          %v170 = vld [vmem:[#allocation3] sm:$0x1]
          %v171 = vrot.slane %v166, 4
          %v172 = vmax.f32 %v166, %v171
          %v173 = vrot.slane %v172, 2
          %v174 = vmax.f32 %v172, %v173
          %v175 = vrot.slane %v174, 1
          %v176 = vmax.f32 %v174, %v175
          %v177 = vmax.f32 %v170, %v176
          %vm178 = vcmp.eq.f32.partialorder %v177, -inf
          %v179 = vsel %vm178, 0.0, %v177
          %v180 = vld [vmem:[#allocation4] sm:$0x1]
          %v181 = vsub.f32 %v170, %v179
          %v182 = vmul.f32 %v181, 1.442695
          %v183 = vpow.pop %v182
          %v184 = vmul.f32 %v180, %v183
          %v186 = vlaneseq
          %v187 = vshrl.u32 %v186, 7
          %v188 = vsub.s32 0, %v187
          %v189 = vrot.slane %v179, %v188
          %v191 = vsub.f32 %v166, %v189
          %v192 = vmul.f32 %v191, 1.442695
          %v193 = vpow.pop %v192
          %v194 = vrot.slane %v193, 4
          %v195 = vadd.f32 %v193, %v194
          %v196 = vrot.slane %v195, 2
          %v197 = vadd.f32 %v195, %v196
          %v198 = vrot.slane %v197, 1
          %v199 = vadd.f32 %v197, %v198
          %v200 = vadd.f32 %v184, %v199
          %201 = vst [vmem:[#allocation4] sm:$0x1] %v200
          %202 = vst [vmem:[#allocation3] sm:$0x1] %v177
        $region36: #{tpu_custom_call.1} parent=23 // pred_fallthru
          _
        %p203 = scmp.eq.s32.totalorder %s22, 1
        %p204 = pnand %p203, %p156
        %p205 = pneg %p204
        // Predicated region
        $region37: #{tpu_custom_call.1} parent=23 // pred_check
          _
        $region38: #{tpu_custom_call.1} parent=23 // pred_check_branch
          %207 = sbr.rel (%p204) target = $region40
        $region39: #{tpu_custom_call.1} parent=23 // pred_region
          %v208 = vld [vmem:[#allocation3] sm:$0x1]
          %vm209 = vcmask 1040384
          %v210 = vsel %vm209, %v208, -inf
          %211 = vmax.xlane.f32.xlu0 %v210
          %v212 = vpop.xlane.xlu0 %211
          %v213 = vrot.slane %v212, 4
          %v214 = vmax.f32 %v212, %v213
          %v215 = vrot.slane %v214, 2
          %v216 = vmax.f32 %v214, %v215
          %v217 = vrot.slane %v216, 1
          %v218 = vmax.f32 %v216, %v217
          %s219 = vtos %v218
          %v220 = vstv %s219
          %vm221 = vcmp.eq.f32.partialorder %v220, -inf
          %v222 = vsel %vm221, 0.0, %v220
          %v223 = vld [vmem:[#allocation4] sm:$0x1]
          %v224 = vsub.f32 %v208, %v222
          %v225 = vmul.f32 %v224, 1.442695
          %v226 = vpow.pop %v225
          %v227 = vmul.f32 %v223, %v226
          %v228 = vsel %vm209, %v227, 0.0
          %229 = vadd.xlane.f32.xlu0 %v228
          %v230 = vpop.xlane.xlu0 %229
          %v231 = vrot.slane %v230, 4
          %v232 = vadd.f32 %v230, %v231
          %v233 = vrot.slane %v232, 2
          %v234 = vadd.f32 %v232, %v233
          %v235 = vrot.slane %v234, 1
          %v236 = vadd.f32 %v234, %v235
          %s237 = vtos %v236
          %v238 = vstv %s237
          %vm239 = vcmask 0
          %240 = vst.msk [vmem:[#allocation5] sm:$0x1] %vm239, %v220
          %v241 = vrcp.pop %v238
          %v242 = vmul.f32 1.0, %v241
          %243 = vst.msk [vmem:[#allocation6] sm:$0x1] %vm239, %v242
        $region40: #{tpu_custom_call.1} parent=23 // pred_fallthru
          _
        // Predicated region
        $region41: #{tpu_custom_call.1} parent=23 // pred_check
          %p244 = pneg %p203
        $region42: #{tpu_custom_call.1} parent=23 // pred_check_branch
          %246 = sbr.rel (%p244) target = $region44
        $region43: #{tpu_custom_call.1} parent=23 // pred_region
          %s247 = smul.u32 %s23, 8
          %s248 = scalar_lea.vmem [#allocation2], %s247
          %v249 = vld [vmem:[%s248] sm:$0xff]
          %v250 = vld [vmem:[#allocation5] sm:$0x1]
          %v252 = vlaneseq
          %v253 = vshrl.u32 %v252, 7
          %v254 = vsub.s32 0, %v253
          %v255 = vrot.slane %v250, %v254
          %256 = vset.pattern.permute.xlu0 0
          %257 = vperm.xlu0 %256, %v255
          %v258 = vpop.permute.xlu0 %257
          %v260 = vsub.f32 %v249, %v258
          %v261 = vmul.f32 %v260, 1.442695
          %v262 = vpow.pop %v261
          %v263 = vld [vmem:[#allocation6] sm:$0x1]
          %v265 = vlaneseq
          %v266 = vshrl.u32 %v265, 7
          %v267 = vsub.s32 0, %v266
          %v268 = vrot.slane %v263, %v267
          %269 = vset.pattern.permute.xlu0 0
          %270 = vperm.xlu0 %269, %v268
          %v271 = vpop.permute.xlu0 %270
          %v273 = vmul.f32 %v262, %v271
          %274 = vst [vmem:[%s151] sm:$0xff] %v273
        $region44: #{tpu_custom_call.1} parent=23 // pred_fallthru
          _
        %s275 = sand.u32 %s70, 1
        %s276 = scalar_lea.sflag [#allocation9], %s275
        %s277 = sand.u32 %s70, 1
        %s278 = smul.addr %s277, 8
        %s279 = scalar_lea.vmem [#allocation10], %s278
        // Predicated region
        $region45: #{tpu_custom_call.1} parent=23 // pred_check
          %p280 = pneg %p80
        $region46: #{tpu_custom_call.1} parent=23 // pred_check_branch
          %282 = sbr.rel (%p280) target = $region48
        $region47: #{tpu_custom_call.1} parent=23 // pred_region
          %s283 = smul.u32 %s23, %s22
          %s285 = ssub.s32 128, 128
          %286 = vsyncadd %s276, %s285
          %s287 = smul.addr %s283, 128
          %s288 = scalar_lea.hbm %s1, %s287
          %s290 = sshll.u32 %s279, 4
          %s291 = int_to_ptr.vmem [resolvable:$true] %s290
          %293 = dma.vmem_to_hbm [thread:$0]  %s291, 128, %s288, %s276
        $region48: #{tpu_custom_call.1} parent=23 // pred_fallthru
          _
      $region24: #{tpu_custom_call.1} parent=5 // pred_fallthru
        _
      %p294 = scmp.le.s32.totalorder 2, %s13
      // Predicated region
      $region49: #{tpu_custom_call.1} parent=5 // pred_check
        %p295 = pneg %p294
      $region50: #{tpu_custom_call.1} parent=5 // pred_check_branch
        %297 = sbr.rel (%p295) target = $region52
      $region51: #{tpu_custom_call.1} parent=5 // pred_region
        %s298 = ssub.s32 %s13, 2
        // Predicated region
        $region53: #{tpu_custom_call.1} parent=51 // pred_check
          %p299 = pneg %p86
        $region54: #{tpu_custom_call.1} parent=51 // pred_check_branch
          %301 = sbr.rel (%p299) target = $region56
        $region55: #{tpu_custom_call.1} parent=51 // pred_region
          %s302 = sand.u32 %s71, 1
          %s303 = scalar_lea.sflag [#allocation9], %s302
          %s304 = sand.u32 %s71, 1
          %s305 = smul.addr %s304, 8
          %s306 = scalar_lea.vmem [#allocation10], %s305
          %307 = dma.done %s303, 128
        $region56: #{tpu_custom_call.1} parent=51 // pred_fallthru
          _
      $region52: #{tpu_custom_call.1} parent=5 // pred_fallthru
        _
    $region6: #{tpu_custom_call.1} parent=1 // loop_footer
      %s17 = sadd.s32 1, %s13
    $region7: #{tpu_custom_call.1} parent=1 // loop_footer_branch
      %12 = sbr.rel target = $region3
    $region8: #{tpu_custom_call.1} parent=1 // loop_exit
      _
    %308 = vsyncpa [#allocation8], 1
    %s309 = scalar_lea.sflag [#allocation8], 1
    %310 = vsyncpa %s309, 1
    %311 = vsyncpa [#allocation9], 1
    %s312 = scalar_lea.sflag [#allocation9], 1
    %313 = vsyncpa %s312, 1

</llo_original>
